<compile_context>
chip_gen: v5e
topology: v5e:2x2
jax: 0.10.0
libtpu: 0.0.40
codegen_flags: <defaults>
</compile_context>

<pallas_src>
import math

import jax
import jax.numpy as jnp
from jax.experimental import pallas as pl
from jax.experimental.pallas import tpu as pltpu

LANE = 128     # lane width (last-dim tiling unit)
SUBLANE = 8    # f32 sublane count


def _round_up(x, m):
    return (x + m - 1) // m * m


def _cdiv(a, b):
    return -(-a // b)


def _pad2d(a, rows, cols):
    r, c = a.shape
    return jnp.pad(a, ((0, rows - r), (0, cols - c)))


def vime_forward_kernel(x_ref, w_enc_ref, b_enc_ref, w_heads_ref, b_heads_ref,
                        out_ref):
    """relu(x @ W_enc + b_enc) -> sigmoid(hidden @ [W_mask|W_feat] + b)."""
    x = x_ref[...]

    # Encoder: MXU matmul with f32 accumulation, bias + ReLU on the VPU.
    hidden = jnp.dot(x, w_enc_ref[...], preferred_element_type=jnp.float32)
    hidden = jnp.maximum(hidden + b_enc_ref[...], 0.0)

    # Both heads fused into a single (hp, out_cols) matmul: one MXU weight
    # push, wider N, and a single lane-dense output store.
    logits = jnp.dot(hidden.astype(w_heads_ref.dtype), w_heads_ref[...],
                     preferred_element_type=jnp.float32) + b_heads_ref[...]
    out_ref[...] = jax.nn.sigmoid(logits).astype(out_ref.dtype)


def prepare_vime_params(params, compute_dtype=jnp.bfloat16):
    """One-time weight preparation (hoisted out of the per-call path).

    Concatenates the two head weights (concat-then-pad), zero-pads every
    feature axis to a multiple of 128 lanes, and casts matmul inputs to
    `compute_dtype` (bf16 recommended on v5e/v6e/v7x; biases stay f32).
    """
    d, h = params["w_enc"].shape
    assert params["w_mask"].shape == (h, d)
    assert params["w_feat"].shape == (h, d)

    dp = _round_up(d, LANE)
    hp = _round_up(h, LANE)
    out_cols = _round_up(2 * d, LANE)            # concat-then-pad head width

    w_heads = jnp.concatenate([params["w_mask"], params["w_feat"]], axis=1)
    b_heads = jnp.concatenate([params["b_mask"], params["b_feat"]], axis=1)

    return {
        "input_dim": d, "hidden_dim": h,
        "dp": dp, "hp": hp, "out_cols": out_cols,
        "compute_dtype": jnp.dtype(compute_dtype),
        "w_enc": _pad2d(params["w_enc"], dp, hp).astype(compute_dtype),
        "b_enc": _pad2d(params["b_enc"], 1, hp).astype(jnp.float32),
        "w_heads": _pad2d(w_heads, hp, out_cols).astype(compute_dtype),
        "b_heads": _pad2d(b_heads, 1, out_cols).astype(jnp.float32),
    }


def vime_encoder_forward(x, prepared, *, batch_tile=None,
                         out_dtype=jnp.float32):
    """Fused VIME encoder forward pass.

    Args:
      x: (N, input_dim) float32.
      prepared: output of prepare_vime_params(params, compute_dtype).
      batch_tile: rows of x per grid step (rounded up to a multiple of 8).
                  Default guarantees >=2 grid steps (v7x megacore) and scales
                  up when the padded feature width is small.
      out_dtype: dtype of the fused sigmoid output (bf16 halves writeback on
                 v5e at a small accuracy cost; default f32).

    Returns:
      (mask_output, feature_output), each (N, input_dim) in out_dtype.
    """
    n, d = x.shape
    assert d == prepared["input_dim"]
    dp, hp, out_cols = prepared["dp"], prepared["hp"], prepared["out_cols"]
    compute_dtype = prepared["compute_dtype"]

    # --- batch tiling -------------------------------------------------------
    if batch_tile is None:
        # Bigger tiles when the padded feature width is small (amortize the
        # ~0.35us per-grid-step overhead), but always allow >=2 grid steps so
        # both v7x TensorCores engage and load/compute/store pipelines.
        cap = 2048 if dp <= 256 else (1024 if dp <= 512 else 512)
        batch_tile = min(cap, _round_up(max(_cdiv(n, 2), SUBLANE), SUBLANE))
    batch_tile = max(SUBLANE, _round_up(int(batch_tile), SUBLANE))
    n_pad = _round_up(n, batch_tile)
    grid = (n_pad // batch_tile,)

    # Per-call input prep: pad batch/lanes and cast matmul input only.
    x_p = _pad2d(x, n_pad, dp).astype(compute_dtype)

    # --- VMEM budget & cost hint -------------------------------------------
    c_item = jnp.dtype(compute_dtype).itemsize
    o_item = jnp.dtype(out_dtype).itemsize
    w_bytes = (dp * hp + hp * out_cols) * c_item + (hp + out_cols) * 4
    tile_bytes = batch_tile * (dp * c_item + out_cols * o_item)   # x + out tile
    hidden_bytes = batch_tile * hp * 4                            # f32 temp
    needed = 2 * tile_bytes + w_bytes + hidden_bytes   # weights single-buffered
    vmem_limit = int(min(max(needed * 3 // 2 + (2 << 20), 32 << 20), 100 << 20))

    cost = pl.CostEstimate(
        flops=2 * n_pad * (dp * hp + hp * out_cols),
        transcendentals=2 * n_pad * out_cols,   # sigmoid ~ exp + reciprocal
        bytes_accessed=(n_pad * dp * c_item          # x
                        + w_bytes                    # weights + biases
                        + n_pad * out_cols * o_item  # output
                        ),
    )

    # Grid-invariant weights/biases: fetched once, single-buffered.
    def weight_spec(shape):
        return pl.BlockSpec(shape, lambda i: (0, 0),
                            pipeline_mode=pl.Buffered(1))

    out_p = pl.pallas_call(
        vime_forward_kernel,
        out_shape=jax.ShapeDtypeStruct((n_pad, out_cols), out_dtype),
        grid_spec=pltpu.PrefetchScalarGridSpec(
            num_scalar_prefetch=0,
            grid=grid,
            in_specs=[
                pl.BlockSpec((batch_tile, dp), lambda i: (i, 0)),  # x tile
                weight_spec((dp, hp)),                             # W_enc
                weight_spec((1, hp)),                              # b_enc
                weight_spec((hp, out_cols)),                       # [W_mask|W_feat]
                weight_spec((1, out_cols)),                        # [b_mask|b_feat]
            ],
            out_specs=pl.BlockSpec((batch_tile, out_cols), lambda i: (i, 0)),
        ),
        compiler_params=pltpu.CompilerParams(
            dimension_semantics=("parallel",),
            vmem_limit_bytes=vmem_limit),
        cost_estimate=cost,
    )(x_p, prepared["w_enc"], prepared["b_enc"],
      prepared["w_heads"], prepared["b_heads"])

    # Strip batch padding and split the fused head output ([mask | feat | pad]).
    mask_out = out_p[:n, :d]
    feat_out = out_p[:n, d:2 * d]
    return mask_out, feat_out


def init_vime_params(key, input_dim, hidden_dim):
    """PyTorch-Linear-style init: U(-1/sqrt(fan_in), 1/sqrt(fan_in)).

    Weights are stored transposed relative to nn.Linear, i.e. (in_dim, out_dim).
    """
    k = jax.random.split(key, 6)

    def linear(kw, kb, fan_in, fan_out):
        bound = 1.0 / math.sqrt(fan_in)
        w = jax.random.uniform(kw, (fan_in, fan_out), jnp.float32, -bound, bound)
        b = jax.random.uniform(kb, (1, fan_out), jnp.float32, -bound, bound)
        return w, b

    w_enc, b_enc = linear(k[0], k[1], input_dim, hidden_dim)
    w_mask, b_mask = linear(k[2], k[3], hidden_dim, input_dim)
    w_feat, b_feat = linear(k[4], k[5], hidden_dim, input_dim)
    return {"w_enc": w_enc, "b_enc": b_enc,
            "w_mask": w_mask, "b_mask": b_mask,
            "w_feat": w_feat, "b_feat": b_feat}


def vime_forward_ref(x, p):
    """Pure-JAX reference for correctness checking."""
    hidden = jnp.maximum(x @ p["w_enc"] + p["b_enc"], 0.0)
    mask_out = jax.nn.sigmoid(hidden @ p["w_mask"] + p["b_mask"])
    feat_out = jax.nn.sigmoid(hidden @ p["w_feat"] + p["b_feat"])
    return mask_out, feat_out


# TODO(synk): train_encoder / mask_generator / pretext_generator are host-side
# training utilities (Adam loop, Bernoulli masks, per-column permutations), not
# part of the module's forward pass, so they are not translated to Pallas.

if __name__ == "__main__":
    key = jax.random.PRNGKey(0)
    k_param, k_x = jax.random.split(key)

    batch = 50          # deliberately ragged: exercises batch padding
    input_dim = 16
    hidden_dim = 32

    params = init_vime_params(k_param, input_dim, hidden_dim)
    x = jax.random.normal(k_x, (batch, input_dim), jnp.float32)
    mask_ref, feat_ref = vime_forward_ref(x, params)

    # --- default bf16-matmul path (f32 accumulate / activations) ------------
    prep_bf16 = prepare_vime_params(params)                 # bf16 default
    mask_out, feat_out = vime_encoder_forward(x, prep_bf16, batch_tile=16)
    jax.block_until_ready((mask_out, feat_out))
    assert mask_out.shape == (batch, input_dim)
    assert feat_out.shape == (batch, input_dim)
    assert jnp.allclose(mask_out, mask_ref, atol=2e-2, rtol=2e-2)
    assert jnp.allclose(feat_out, feat_ref, atol=2e-2, rtol=2e-2)

    # --- f32 path with default batch_tile: tight correctness check ----------
    prep_f32 = prepare_vime_params(params, compute_dtype=jnp.float32)
    mask32, feat32 = vime_encoder_forward(x, prep_f32)
    jax.block_until_ready((mask32, feat32))
    assert jnp.allclose(mask32, mask_ref, atol=1e-4, rtol=1e-4)
    assert jnp.allclose(feat32, feat_ref, atol=1e-4, rtol=1e-4)

    print("KERNEL_OK")
</pallas_src>

<mosaic_0001>
module attributes {stable_mosaic.version = 11 : i64} {
  func.func @vime_forward_kernel(%arg0: i32, %arg1: memref<16x128xbf16, #tpu.memory_space<vmem>>, %arg2: memref<128x128xbf16, #tpu.memory_space<vmem>>, %arg3: memref<1x128xf32, #tpu.memory_space<vmem>>, %arg4: memref<128x128xbf16, #tpu.memory_space<vmem>>, %arg5: memref<1x128xf32, #tpu.memory_space<vmem>>, %arg6: memref<16x128xf32, #tpu.memory_space<vmem>>) attributes {dimension_semantics = [#tpu.dimension_semantics<parallel>], iteration_bounds = array<i64: 4>, scalar_prefetch = 0 : i64, scratch_operands = 0 : i64, tpu.core_type = #tpu.core_type<tc>, window_params = [{transform_indices = @transform_0, window_bounds = array<i64: 16, 128>}, {pipeline_mode = #tpu.pipeline_mode<synchronous>, transform_indices = @transform_1, window_bounds = array<i64: 128, 128>}, {pipeline_mode = #tpu.pipeline_mode<synchronous>, transform_indices = @transform_2, window_bounds = array<i64: 1, 128>}, {pipeline_mode = #tpu.pipeline_mode<synchronous>, transform_indices = @transform_3, window_bounds = array<i64: 128, 128>}, {pipeline_mode = #tpu.pipeline_mode<synchronous>, transform_indices = @transform_4, window_bounds = array<i64: 1, 128>}, {transform_indices = @transform_5, window_bounds = array<i64: 16, 128>}]} {
    %c0 = arith.constant 0 : index
    %c0_0 = arith.constant 0 : index
    %0 = vector.load %arg1[%c0, %c0_0] : memref<16x128xbf16, #tpu.memory_space<vmem>>, vector<16x128xbf16>
    %c0_1 = arith.constant 0 : index
    %c0_2 = arith.constant 0 : index
    %1 = vector.load %arg2[%c0_1, %c0_2] : memref<128x128xbf16, #tpu.memory_space<vmem>>, vector<128x128xbf16>
    %cst = arith.constant dense<0.000000e+00> : vector<16x128xf32>
    %2 = tpu.matmul %0, %1, %cst {dimension_numbers = #tpu.dot_dimension_numbers<[1], [0], [0], [1], [0, 0, 1, 1], [], []>} : vector<16x128xbf16>, vector<128x128xbf16>, vector<16x128xf32> -> vector<16x128xf32>
    %c0_3 = arith.constant 0 : index
    %c0_4 = arith.constant 0 : index
    %3 = vector.load %arg3[%c0_3, %c0_4] : memref<1x128xf32, #tpu.memory_space<vmem>>, vector<1x128xf32>
    %4 = vector.broadcast %3 : vector<1x128xf32> to vector<16x128xf32>
    %5 = arith.addf %2, %4 : vector<16x128xf32>
    %cst_5 = arith.constant 0.000000e+00 : f32
    %6 = vector.broadcast %cst_5 : f32 to vector<16x128xf32>
    %7 = arith.maximumf %5, %6 : vector<16x128xf32>
    %8 = arith.truncf %7 : vector<16x128xf32> to vector<16x128xbf16>
    %c0_6 = arith.constant 0 : index
    %c0_7 = arith.constant 0 : index
    %9 = vector.load %arg4[%c0_6, %c0_7] : memref<128x128xbf16, #tpu.memory_space<vmem>>, vector<128x128xbf16>
    %cst_8 = arith.constant dense<0.000000e+00> : vector<16x128xf32>
    %10 = tpu.matmul %8, %9, %cst_8 {dimension_numbers = #tpu.dot_dimension_numbers<[1], [0], [0], [1], [0, 0, 1, 1], [], []>} : vector<16x128xbf16>, vector<128x128xbf16>, vector<16x128xf32> -> vector<16x128xf32>
    %c0_9 = arith.constant 0 : index
    %c0_10 = arith.constant 0 : index
    %11 = vector.load %arg5[%c0_9, %c0_10] : memref<1x128xf32, #tpu.memory_space<vmem>>, vector<1x128xf32>
    %12 = vector.broadcast %11 : vector<1x128xf32> to vector<16x128xf32>
    %13 = arith.addf %10, %12 : vector<16x128xf32>
    %14 = arith.negf %13 : vector<16x128xf32>
    %15 = math.exp %14 : vector<16x128xf32>
    %cst_11 = arith.constant 1.000000e+00 : f32
    %16 = vector.broadcast %cst_11 : f32 to vector<16x128xf32>
    %17 = arith.addf %16, %15 : vector<16x128xf32>
    %18 = arith.divf %16, %17 : vector<16x128xf32>
    %c0_12 = arith.constant 0 : index
    %c0_13 = arith.constant 0 : index
    %19 = vector.load %arg6[%c0_12, %c0_13] : memref<16x128xf32, #tpu.memory_space<vmem>>, vector<16x128xf32>
    tpu.vector_store %arg6[%c0_12, %c0_13], %18 {strides = array<i32>} : memref<16x128xf32, #tpu.memory_space<vmem>>, vector<16x128xf32>,
    return
  }
  func.func @transform_0(%arg0: i32) -> (i32, i32) {
    %c0_i32 = arith.constant 0 : i32
    %c0_i32_0 = arith.constant 0 : i32
    return %arg0, %c0_i32 : i32, i32
  }
  func.func @transform_1(%arg0: i32) -> (i32, i32) {
    %c0_i32 = arith.constant 0 : i32
    %c0_i32_0 = arith.constant 0 : i32
    %c0_i32_1 = arith.constant 0 : i32
    return %c0_i32, %c0_i32_0 : i32, i32
  }
  func.func @transform_2(%arg0: i32) -> (i32, i32) {
    %c0_i32 = arith.constant 0 : i32
    %c0_i32_0 = arith.constant 0 : i32
    %c0_i32_1 = arith.constant 0 : i32
    return %c0_i32, %c0_i32_0 : i32, i32
  }
  func.func @transform_3(%arg0: i32) -> (i32, i32) {
    %c0_i32 = arith.constant 0 : i32
    %c0_i32_0 = arith.constant 0 : i32
    %c0_i32_1 = arith.constant 0 : i32
    return %c0_i32, %c0_i32_0 : i32, i32
  }
  func.func @transform_4(%arg0: i32) -> (i32, i32) {
    %c0_i32 = arith.constant 0 : i32
    %c0_i32_0 = arith.constant 0 : i32
    %c0_i32_1 = arith.constant 0 : i32
    return %c0_i32, %c0_i32_0 : i32, i32
  }
  func.func @transform_5(%arg0: i32) -> (i32, i32) {
    %c0_i32 = arith.constant 0 : i32
    %c0_i32_0 = arith.constant 0 : i32
    return %arg0, %c0_i32 : i32, i32
  }
}

</mosaic_0001>

<llo_original>
// kernel: tpu_custom_call.1
$region0: #{tpu_custom_call.1}
  #allocation0 [shape = 'u32[]', space=smem, size = 0x4, offset = 0x4, fixed_abs, tag = 'smem constant byte address 0x4 - core index']
  #allocation1 [shape = 'u32[72,128]{1,0:T(1,128)}', space=vmem, size = 0x9000, scoped, tag = 'internal scratch']
  %s0 = inlined_call_operand.hbm [shape: bf16[64,128], index: 0, kind: input, shape index: {}]
  %s1 = inlined_call_operand.hbm [shape: bf16[128,128], index: 1, kind: input, shape index: {}]
  %s2 = inlined_call_operand.vmem [shape: f32[1,128], index: 2, kind: input, shape index: {}]
  %s3 = inlined_call_operand.hbm [shape: bf16[128,128], index: 3, kind: input, shape index: {}]
  %s4 = inlined_call_operand.vmem [shape: f32[1,128], index: 4, kind: input, shape index: {}]
  %s5 = inlined_call_operand.hbm [shape: f32[64,128], index: 5, kind: output, shape index: {}]
  %s6 = sld [smem:[#allocation0]]
  $region65: #{tpu_custom_call.1} parent=0
    _
  %s8 = ssub.s32 1, %s6
  %s9 = scalar_select 0, %s8, %s6
  $region1: #{tpu_custom_call.1} parent=0
    #allocation2 [shape = 'u8[8192]{0}', space=vmem, size = 0x2000, scoped, tag = 'input window, operand 0']
    #allocation3 [shape = 's32[2]{0}', space=sflag, size = 0x8, scoped, tag = 'scoped memory for tpu_custom_call.1']
    #allocation4 [shape = 's32[2]{0}', space=sflag, size = 0x8, scoped, tag = 'scoped memory for tpu_custom_call.1']
    #allocation5 [shape = 'u8[32768]{0}', space=vmem, size = 0x8000, scoped, tag = 'input window, operand 1, single buffered']
    #allocation6 [shape = 's32[1]{0}', space=sflag, size = 0x4, scoped, tag = 'scoped memory for tpu_custom_call.1']
    #allocation7 [shape = 'u8[32768]{0}', space=vmem, size = 0x8000, scoped, tag = 'input window, operand 3, single buffered']
    #allocation8 [shape = 'u8[16384]{0}', space=vmem, size = 0x4000, scoped, tag = 'output window, operand 0']
    %10 = vsyncpa [#allocation3], 0
    %s11 = scalar_lea.sflag [#allocation3], 1
    %12 = vsyncpa %s11, 0
    %13 = vsyncpa [#allocation6], 0
    %14 = vsyncpa [#allocation4], 0
    %s15 = scalar_lea.sflag [#allocation4], 1
    %16 = vsyncpa %s15, 0
    loop: start=0, step=1, limit=6
    $region2: #{tpu_custom_call.1} parent=1 // loop_pre_header
      _
    $region3: #{tpu_custom_call.1} parent=1 // loop_header
      %s18 = sphi 0, %s22
      %p19 = scmp.ge.s32.totalorder %s18, 6
      %s28 = sphi 0, %s30
      %s31 = sphi 0, %s28
      %s32 = sphi 0, %s31
      %s48 = sphi 0, %s32
      %s52 = sphi 0, %s52
      %s54 = sphi 0, %s52
      %s55 = sphi 0, %s54
      %s69 = sphi 0, %s55
      %s73 = sphi 0, %s73
      %s75 = sphi 0, %s73
      %s76 = sphi 0, %s75
      %s90 = sphi 0, %s76
      %s94 = sphi 0, %s94
      %s96 = sphi 0, %s94
      %s97 = sphi 0, %s96
      %s111 = sphi 0, %s97
      %s115 = sphi 0, %s115
      %s117 = sphi 0, %s115
      %s118 = sphi 0, %s117
      %s132 = sphi 0, %s118
      %s138 = sphi 0, %s140
      %s141 = sphi 0, %s138
      %s142 = sphi 0, %s141
      %s158 = sphi 0, %s142
    $region4: #{tpu_custom_call.1} parent=1 // loop_header_branch
      %21 = sbr.rel (%p19) target = $region8
    $region5: #{tpu_custom_call.1} parent=1 // loop_body
      %s23 = ssub.s32 %s18, 1
      %s24 = ssub.s32 %s18, 2
      %s25 = sadd.s32 %s18, 1
      %s26 = ssub.s32 %s18, %s25
      %p27 = scmp.eq.s32.totalorder %s26, 0
      %s29 = sadd.s32 %s28, 1
      %s30 = scalar_select %p27, %s28, %s29
      %p33 = pneg %p27
      %p34 = scmp.eq.s32.totalorder %s18, 3
      %p35 = por %p33, %p34
      %p36 = scmp.ne.s32.totalorder %s28, %s31
      %p37 = scmp.eq.s32.totalorder %s18, 0
      %p38 = por %p36, %p37
      %p39 = scmp.ne.s32.totalorder %s28, %s31
      %p40 = scmp.eq.s32.totalorder %s23, 3
      %p41 = por %p39, %p40
      %p42 = scmp.ne.s32.totalorder %s31, %s32
      %p43 = scmp.eq.s32.totalorder %s23, 0
      %p44 = por %p42, %p43
      %p45 = scmp.ne.s32.totalorder %s31, %s32
      %p46 = scmp.eq.s32.totalorder %s24, 3
      %p47 = por %p45, %p46
      %p49 = scmp.ne.s32.totalorder %s32, %s48
      %p50 = scmp.eq.s32.totalorder %s24, 0
      %p51 = por %p49, %p50
      %s53 = sadd.s32 %s52, 1
      %p56 = scmp.eq.s32.totalorder %s18, 3
      %p57 = scmp.ne.s32.totalorder %s52, %s54
      %p58 = scmp.eq.s32.totalorder %s18, 0
      %p59 = por %p57, %p58
      %p60 = scmp.ne.s32.totalorder %s52, %s54
      %p61 = scmp.eq.s32.totalorder %s23, 3
      %p62 = por %p60, %p61
      %p63 = scmp.ne.s32.totalorder %s54, %s55
      %p64 = scmp.eq.s32.totalorder %s23, 0
      %p65 = por %p63, %p64
      %p66 = scmp.ne.s32.totalorder %s54, %s55
      %p67 = scmp.eq.s32.totalorder %s24, 3
      %p68 = por %p66, %p67
      %p70 = scmp.ne.s32.totalorder %s55, %s69
      %p71 = scmp.eq.s32.totalorder %s24, 0
      %p72 = por %p70, %p71
      %s74 = sadd.s32 %s73, 1
      %p77 = scmp.eq.s32.totalorder %s18, 3
      %p78 = scmp.ne.s32.totalorder %s73, %s75
      %p79 = scmp.eq.s32.totalorder %s18, 0
      %p80 = por %p78, %p79
      %p81 = scmp.ne.s32.totalorder %s73, %s75
      %p82 = scmp.eq.s32.totalorder %s23, 3
      %p83 = por %p81, %p82
      %p84 = scmp.ne.s32.totalorder %s75, %s76
      %p85 = scmp.eq.s32.totalorder %s23, 0
      %p86 = por %p84, %p85
      %p87 = scmp.ne.s32.totalorder %s75, %s76
      %p88 = scmp.eq.s32.totalorder %s24, 3
      %p89 = por %p87, %p88
      %p91 = scmp.ne.s32.totalorder %s76, %s90
      %p92 = scmp.eq.s32.totalorder %s24, 0
      %p93 = por %p91, %p92
      %s95 = sadd.s32 %s94, 1
      %p98 = scmp.eq.s32.totalorder %s18, 3
      %p99 = scmp.ne.s32.totalorder %s94, %s96
      %p100 = scmp.eq.s32.totalorder %s18, 0
      %p101 = por %p99, %p100
      %p102 = scmp.ne.s32.totalorder %s94, %s96
      %p103 = scmp.eq.s32.totalorder %s23, 3
      %p104 = por %p102, %p103
      %p105 = scmp.ne.s32.totalorder %s96, %s97
      %p106 = scmp.eq.s32.totalorder %s23, 0
      %p107 = por %p105, %p106
      %p108 = scmp.ne.s32.totalorder %s96, %s97
      %p109 = scmp.eq.s32.totalorder %s24, 3
      %p110 = por %p108, %p109
      %p112 = scmp.ne.s32.totalorder %s97, %s111
      %p113 = scmp.eq.s32.totalorder %s24, 0
      %p114 = por %p112, %p113
      %s116 = sadd.s32 %s115, 1
      %p119 = scmp.eq.s32.totalorder %s18, 3
      %p120 = scmp.ne.s32.totalorder %s115, %s117
      %p121 = scmp.eq.s32.totalorder %s18, 0
      %p122 = por %p120, %p121
      %p123 = scmp.ne.s32.totalorder %s115, %s117
      %p124 = scmp.eq.s32.totalorder %s23, 3
      %p125 = por %p123, %p124
      %p126 = scmp.ne.s32.totalorder %s117, %s118
      %p127 = scmp.eq.s32.totalorder %s23, 0
      %p128 = por %p126, %p127
      %p129 = scmp.ne.s32.totalorder %s117, %s118
      %p130 = scmp.eq.s32.totalorder %s24, 3
      %p131 = por %p129, %p130
      %p133 = scmp.ne.s32.totalorder %s118, %s132
      %p134 = scmp.eq.s32.totalorder %s24, 0
      %p135 = por %p133, %p134
      %s136 = ssub.s32 %s18, %s25
      %p137 = scmp.eq.s32.totalorder %s136, 0
      %s139 = sadd.s32 %s138, 1
      %s140 = scalar_select %p137, %s138, %s139
      %p143 = pneg %p137
      %p144 = scmp.eq.s32.totalorder %s18, 3
      %p145 = por %p143, %p144
      %p146 = scmp.ne.s32.totalorder %s138, %s141
      %p147 = scmp.eq.s32.totalorder %s18, 0
      %p148 = por %p146, %p147
      %p149 = scmp.ne.s32.totalorder %s138, %s141
      %p150 = scmp.eq.s32.totalorder %s23, 3
      %p151 = por %p149, %p150
      %p152 = scmp.ne.s32.totalorder %s141, %s142
      %p153 = scmp.eq.s32.totalorder %s23, 0
      %p154 = por %p152, %p153
      %p155 = scmp.ne.s32.totalorder %s141, %s142
      %p156 = scmp.eq.s32.totalorder %s24, 3
      %p157 = por %p155, %p156
      %p159 = scmp.ne.s32.totalorder %s142, %s158
      %p160 = scmp.eq.s32.totalorder %s24, 0
      %p161 = por %p159, %p160
      %p162 = scmp.le.s32.totalorder 1, %s18
      %p163 = scmp.lt.s32.totalorder %s18, 5
      %p164 = pnand %p162, %p163
      %p165 = pneg %p164
      // Predicated region
      $region9: #{tpu_custom_call.1} parent=5 // pred_check
        _
      $region10: #{tpu_custom_call.1} parent=5 // pred_check_branch
        %167 = sbr.rel (%p164) target = $region12
      $region11: #{tpu_custom_call.1} parent=5 // pred_region
        %s168 = ssub.s32 %s18, 1
        // Predicated region
        $region13: #{tpu_custom_call.1} parent=11 // pred_check
          %p169 = pneg %p65
        $region14: #{tpu_custom_call.1} parent=11 // pred_check_branch
          %171 = sbr.rel (%p169) target = $region16
        $region15: #{tpu_custom_call.1} parent=11 // pred_region
          %173 = vsyncadd [#allocation6], 0
          %s174 = sshll.u32 %s1, 4
          %s175 = int_to_ptr.hbm [resolvable:$true] %s174
          %s176 = sshll.u32 [#allocation5], 4
          %s177 = int_to_ptr.vmem [resolvable:$true] %s176
          %182 = dma.hbm_to_vmem [thread:$0]  %s175, 1024, %s177, [#allocation6], 64, 64, 4
        $region16: #{tpu_custom_call.1} parent=11 // pred_fallthru
          _
        // Predicated region
        $region17: #{tpu_custom_call.1} parent=11 // pred_check
          %p183 = pneg %p86
        $region18: #{tpu_custom_call.1} parent=11 // pred_check_branch
          %185 = sbr.rel (%p183) target = $region20
        $region19: #{tpu_custom_call.1} parent=11 // pred_region
          _
        $region20: #{tpu_custom_call.1} parent=11 // pred_fallthru
          _
        // Predicated region
        $region21: #{tpu_custom_call.1} parent=11 // pred_check
          %p186 = pneg %p107
        $region22: #{tpu_custom_call.1} parent=11 // pred_check_branch
          %188 = sbr.rel (%p186) target = $region24
        $region23: #{tpu_custom_call.1} parent=11 // pred_region
          %190 = vsyncadd [#allocation6], 0
          %s191 = sshll.u32 %s3, 4
          %s192 = int_to_ptr.hbm [resolvable:$true] %s191
          %s193 = sshll.u32 [#allocation7], 4
          %s194 = int_to_ptr.vmem [resolvable:$true] %s193
          %199 = dma.hbm_to_vmem [thread:$0]  %s192, 1024, %s194, [#allocation6], 64, 64, 4
        $region24: #{tpu_custom_call.1} parent=11 // pred_fallthru
          _
        // Predicated region
        $region25: #{tpu_custom_call.1} parent=11 // pred_check
          %p200 = pneg %p128
        $region26: #{tpu_custom_call.1} parent=11 // pred_check_branch
          %202 = sbr.rel (%p200) target = $region28
        $region27: #{tpu_custom_call.1} parent=11 // pred_region
          _
        $region28: #{tpu_custom_call.1} parent=11 // pred_fallthru
          _
      $region12: #{tpu_custom_call.1} parent=5 // pred_fallthru
        _
      %p203 = scmp.lt.s32.totalorder %s18, 4
      // Predicated region
      $region29: #{tpu_custom_call.1} parent=5 // pred_check
        %p204 = pneg %p203
      $region30: #{tpu_custom_call.1} parent=5 // pred_check_branch
        %206 = sbr.rel (%p204) target = $region32
      $region31: #{tpu_custom_call.1} parent=5 // pred_region
        // Predicated region
        $region33: #{tpu_custom_call.1} parent=31 // pred_check
          %p207 = pneg %p38
        $region34: #{tpu_custom_call.1} parent=31 // pred_check_branch
          %209 = sbr.rel (%p207) target = $region36
        $region35: #{tpu_custom_call.1} parent=31 // pred_region
          %s210 = sand.u32 %s28, 1
          %s211 = scalar_lea.sflag [#allocation3], %s210
          %s212 = sand.u32 %s28, 1
          %s213 = smul.addr %s212, 8
          %s214 = scalar_lea.vmem [#allocation2], %s213
          %s215 = smul.u32 2, %s18
          %217 = vsyncadd %s211, 0
          %s218 = smul.addr %s215, 4
          %s219 = scalar_lea.hbm %s0, %s218
          %s220 = sshll.u32 %s219, 4
          %s221 = int_to_ptr.hbm [resolvable:$true] %s220
          %s222 = sshll.u32 %s214, 4
          %s223 = int_to_ptr.vmem [resolvable:$true] %s222
          %228 = dma.hbm_to_vmem [thread:$0]  %s221, 128, %s223, %s211, 64, 64, 4
        $region36: #{tpu_custom_call.1} parent=31 // pred_fallthru
          _
      $region32: #{tpu_custom_call.1} parent=5 // pred_fallthru
        _
      %p229 = scmp.le.s32.totalorder 1, %s18
      %p230 = scmp.lt.s32.totalorder %s18, 5
      %p231 = pnand %p229, %p230
      %p232 = pneg %p231
      // Predicated region
      $region37: #{tpu_custom_call.1} parent=5 // pred_check
        _
      $region38: #{tpu_custom_call.1} parent=5 // pred_check_branch
        %234 = sbr.rel (%p231) target = $region40
      $region39: #{tpu_custom_call.1} parent=5 // pred_region
        %s235 = ssub.s32 %s18, 1
        %s236 = sand.u32 %s31, 1
        %s237 = scalar_lea.sflag [#allocation3], %s236
        %s238 = sand.u32 %s31, 1
        %s239 = smul.addr %s238, 8
        %s240 = scalar_lea.vmem [#allocation2], %s239
        // Predicated region
        $region41: #{tpu_custom_call.1} parent=39 // pred_check
          %p241 = pneg %p44
        $region42: #{tpu_custom_call.1} parent=39 // pred_check_branch
          %243 = sbr.rel (%p241) target = $region44
        $region43: #{tpu_custom_call.1} parent=39 // pred_region
          %245 = dma.done %s237, 128
        $region44: #{tpu_custom_call.1} parent=39 // pred_fallthru
          _
        // Predicated region
        $region45: #{tpu_custom_call.1} parent=39 // pred_check
          %p246 = pneg %p65
        $region46: #{tpu_custom_call.1} parent=39 // pred_check_branch
          %248 = sbr.rel (%p246) target = $region48
        $region47: #{tpu_custom_call.1} parent=39 // pred_region
          %250 = dma.done [#allocation6], 1024
        $region48: #{tpu_custom_call.1} parent=39 // pred_fallthru
          _
        // Predicated region
        $region49: #{tpu_custom_call.1} parent=39 // pred_check
          %p251 = pneg %p107
        $region50: #{tpu_custom_call.1} parent=39 // pred_check_branch
          %253 = sbr.rel (%p251) target = $region52
        $region51: #{tpu_custom_call.1} parent=39 // pred_region
          %255 = dma.done [#allocation6], 1024
        $region52: #{tpu_custom_call.1} parent=39 // pred_fallthru
          _
        %s256 = sand.u32 %s31, 1
        %s257 = scalar_lea.sflag [#allocation3], %s256
        %s258 = sand.u32 %s31, 1
        %s259 = smul.addr %s258, 8
        %s260 = scalar_lea.vmem [#allocation2], %s259
        %p261 = pneg %p44
        %p262 = pneg %p41
        %p263 = pneg %p65
        %p264 = pneg %p62
        %p265 = pneg %p86
        %p266 = pneg %p83
        %p267 = pneg %p107
        %p268 = pneg %p104
        %p269 = pneg %p128
        %p270 = pneg %p125
        %p271 = pneg %p154
        %p272 = pneg %p151
        %s273 = sand.u32 %s141, 1
        %s274 = scalar_lea.sflag [#allocation4], %s273
        %s275 = sand.u32 %s141, 1
        %s276 = smul.addr %s275, 16
        %s277 = scalar_lea.vmem [#allocation8], %s276
        %s278 = smul.u32 2, %s23
        %s279 = smul.u32 2, %s23
        %v280 = vld [vmem:[%s240] sm:$0xf]
        %v281 = vld [vmem:[%s240 + $0x4] sm:$0xf]
        %v282 = vld [vmem:[#allocation5] sm:$0xf]
        %v283 = vld [vmem:[#allocation5 + $0x4] sm:$0xf]
        %v284 = vld [vmem:[#allocation5 + $0x8] sm:$0xf]
        %v285 = vld [vmem:[#allocation5 + $0xc] sm:$0xf]
        %v286 = vld [vmem:[#allocation5 + $0x10] sm:$0xf]
        %v287 = vld [vmem:[#allocation5 + $0x14] sm:$0xf]
        %v288 = vld [vmem:[#allocation5 + $0x18] sm:$0xf]
        %v289 = vld [vmem:[#allocation5 + $0x1c] sm:$0xf]
        %v290 = vld [vmem:[#allocation5 + $0x20] sm:$0xf]
        %v291 = vld [vmem:[#allocation5 + $0x24] sm:$0xf]
        %v292 = vld [vmem:[#allocation5 + $0x28] sm:$0xf]
        %v293 = vld [vmem:[#allocation5 + $0x2c] sm:$0xf]
        %v294 = vld [vmem:[#allocation5 + $0x30] sm:$0xf]
        %v295 = vld [vmem:[#allocation5 + $0x34] sm:$0xf]
        %v296 = vld [vmem:[#allocation5 + $0x38] sm:$0xf]
        %v297 = vld [vmem:[#allocation5 + $0x3c] sm:$0xf]
        %v298 = vld [vmem:[%s2] sm:$0x1]
        %v300 = vperm.slane %v298, 0
        %v304 = vunpack.c.l.b16 %v280
        %v305 = vunpack.c.l.b16 %v281
        %v306 = vpack.c.b16 %v305, %v304
        %v324 = vunpack.c.l.b16 %v282
        %v325 = vunpack.c.l.b16 %v283
        %v326 = vunpack.c.l.b16 %v284
        %v327 = vunpack.c.l.b16 %v285
        %v328 = vunpack.c.l.b16 %v286
        %v329 = vunpack.c.l.b16 %v287
        %v330 = vunpack.c.l.b16 %v288
        %v331 = vunpack.c.l.b16 %v289
        %v332 = vunpack.c.l.b16 %v290
        %v333 = vunpack.c.l.b16 %v291
        %v334 = vunpack.c.l.b16 %v292
        %v335 = vunpack.c.l.b16 %v293
        %v336 = vunpack.c.l.b16 %v294
        %v337 = vunpack.c.l.b16 %v295
        %v338 = vunpack.c.l.b16 %v296
        %v339 = vunpack.c.l.b16 %v297
        %v340 = vpack.c.b16 %v325, %v324
        %v341 = vpack.c.b16 %v327, %v326
        %v342 = vpack.c.b16 %v329, %v328
        %v343 = vpack.c.b16 %v331, %v330
        %v344 = vpack.c.b16 %v333, %v332
        %v345 = vpack.c.b16 %v335, %v334
        %v346 = vpack.c.b16 %v337, %v336
        %v347 = vpack.c.b16 %v339, %v338
        %356 = vmatpush.bf16.msra.mxu0 %v347
        %357 = vmatpush.bf16.msra.mxu0 %v346
        %358 = vmatpush.bf16.msra.mxu0 %v345
        %359 = vmatpush.bf16.msra.mxu0 %v344
        %360 = vmatpush.bf16.msra.mxu0 %v343
        %361 = vmatpush.bf16.msra.mxu0 %v342
        %362 = vmatpush.bf16.msra.mxu0 %v341
        %363 = vmatpush.bf16.msra.mxu0 %v340
        %364 = vmatmul.bf16.gmra.mxu0 %v306
        %v365 = vpop.f32.mrf.mxu0
        %v366 = vadd.f32 %v300, %v365
        %v367 = vpop.f32.mrf.mxu0
        %v368 = vadd.f32 %v300, %v367
        %369 = vdwg.mxu0
        %v370 = vmax.f32 %v366, 0.0
        %v371 = vmax.f32 %v368, 0.0
        %v372 = vpack.c.bf16 %v371, %v370
        %v373 = vld [vmem:[#allocation7] sm:$0xf]
        %v374 = vld [vmem:[#allocation7 + $0x4] sm:$0xf]
        %v375 = vld [vmem:[#allocation7 + $0x8] sm:$0xf]
        %v376 = vld [vmem:[#allocation7 + $0xc] sm:$0xf]
        %v377 = vld [vmem:[#allocation7 + $0x10] sm:$0xf]
        %v378 = vld [vmem:[#allocation7 + $0x14] sm:$0xf]
        %v379 = vld [vmem:[#allocation7 + $0x18] sm:$0xf]
        %v380 = vld [vmem:[#allocation7 + $0x1c] sm:$0xf]
        %v381 = vld [vmem:[#allocation7 + $0x20] sm:$0xf]
        %v382 = vld [vmem:[#allocation7 + $0x24] sm:$0xf]
        %v383 = vld [vmem:[#allocation7 + $0x28] sm:$0xf]
        %v384 = vld [vmem:[#allocation7 + $0x2c] sm:$0xf]
        %v385 = vld [vmem:[#allocation7 + $0x30] sm:$0xf]
        %v386 = vld [vmem:[#allocation7 + $0x34] sm:$0xf]
        %v387 = vld [vmem:[#allocation7 + $0x38] sm:$0xf]
        %v388 = vld [vmem:[#allocation7 + $0x3c] sm:$0xf]
        %v389 = vld [vmem:[%s4] sm:$0x1]
        %v391 = vperm.slane %v389, 0
        %v409 = vunpack.c.l.b16 %v373
        %v410 = vunpack.c.l.b16 %v374
        %v411 = vunpack.c.l.b16 %v375
        %v412 = vunpack.c.l.b16 %v376
        %v413 = vunpack.c.l.b16 %v377
        %v414 = vunpack.c.l.b16 %v378
        %v415 = vunpack.c.l.b16 %v379
        %v416 = vunpack.c.l.b16 %v380
        %v417 = vunpack.c.l.b16 %v381
        %v418 = vunpack.c.l.b16 %v382
        %v419 = vunpack.c.l.b16 %v383
        %v420 = vunpack.c.l.b16 %v384
        %v421 = vunpack.c.l.b16 %v385
        %v422 = vunpack.c.l.b16 %v386
        %v423 = vunpack.c.l.b16 %v387
        %v424 = vunpack.c.l.b16 %v388
        %v425 = vpack.c.b16 %v410, %v409
        %v426 = vpack.c.b16 %v412, %v411
        %v427 = vpack.c.b16 %v414, %v413
        %v428 = vpack.c.b16 %v416, %v415
        %v429 = vpack.c.b16 %v418, %v417
        %v430 = vpack.c.b16 %v420, %v419
        %v431 = vpack.c.b16 %v422, %v421
        %v432 = vpack.c.b16 %v424, %v423
        %441 = vmatpush.bf16.msra.mxu0 %v432
        %442 = vmatpush.bf16.msra.mxu0 %v431
        %443 = vmatpush.bf16.msra.mxu0 %v430
        %444 = vmatpush.bf16.msra.mxu0 %v429
        %445 = vmatpush.bf16.msra.mxu0 %v428
        %446 = vmatpush.bf16.msra.mxu0 %v427
        %447 = vmatpush.bf16.msra.mxu0 %v426
        %448 = vmatpush.bf16.msra.mxu0 %v425
        %449 = vmatmul.bf16.gmra.mxu0 %v372
        %v450 = vpop.f32.mrf.mxu0
        %v451 = vadd.f32 %v391, %v450
        %v452 = vpop.f32.mrf.mxu0
        %v453 = vadd.f32 %v391, %v452
        %454 = vdwg.mxu0
        %v455 = vxor.u32 %v451, 2147483648
        %v456 = vxor.u32 %v453, 2147483648
        %v457 = vmul.f32 %v455, 1.442695
        %v458 = vpow.pop %v457
        %v459 = vmul.f32 %v456, 1.442695
        %v460 = vpow.pop %v459
        %v461 = vadd.f32 %v458, 1.0
        %v462 = vadd.f32 %v460, 1.0
        %v463 = vrcp.pop %v461
        %v464 = vmul.f32 %v461, %v463
        %v465 = vsub.f32 1.0, %v464
        %v466 = vmul.f32 %v463, %v465
        %v467 = vadd.f32 %v463, %v466
        %vm468 = vweird.f32 %v461
        %vm469 = vweird.f32 %v463
        %vm470 = vmor %vm468, %vm469
        %v471 = vsel %vm470, %v463, %v467
        %v472 = vand.u32 2147483647, %v461
        %vm473 = vcmp.eq.f32.partialorder %v472, 8.507059e+37
        %v474 = vand.u32 %v461, 2147483648
        %v475 = vor.u32 1.1754944e-38, %v474
        %v476 = vsel %vm473, %v475, %v471
        %v477 = vmul.f32 1.0, %v476
        %v478 = vrcp.pop %v462
        %v479 = vmul.f32 %v462, %v478
        %v480 = vsub.f32 1.0, %v479
        %v481 = vmul.f32 %v478, %v480
        %v482 = vadd.f32 %v478, %v481
        %vm483 = vweird.f32 %v462
        %vm484 = vweird.f32 %v478
        %vm485 = vmor %vm483, %vm484
        %v486 = vsel %vm485, %v478, %v482
        %v487 = vand.u32 2147483647, %v462
        %vm488 = vcmp.eq.f32.partialorder %v487, 8.507059e+37
        %v489 = vand.u32 %v462, 2147483648
        %v490 = vor.u32 1.1754944e-38, %v489
        %v491 = vsel %vm488, %v490, %v486
        %v492 = vmul.f32 1.0, %v491
        %493 = vst [vmem:[%s277] sm:$0xff] %v477
        %494 = vst [vmem:[%s277 + $0x8] sm:$0xff] %v492
        %s495 = sand.u32 %s141, 1
        %s496 = scalar_lea.sflag [#allocation4], %s495
        %s497 = sand.u32 %s141, 1
        %s498 = smul.addr %s497, 16
        %s499 = scalar_lea.vmem [#allocation8], %s498
        // Predicated region
        $region53: #{tpu_custom_call.1} parent=39 // pred_check
          %p500 = pneg %p151
        $region54: #{tpu_custom_call.1} parent=39 // pred_check_branch
          %502 = sbr.rel (%p500) target = $region56
        $region55: #{tpu_custom_call.1} parent=39 // pred_region
          %s503 = smul.u32 2, %s23
          %505 = vsyncadd %s496, 0
          %s506 = smul.addr %s503, 8
          %s507 = scalar_lea.hbm %s5, %s506
          %s508 = sshll.u32 %s499, 4
          %s509 = int_to_ptr.vmem [resolvable:$true] %s508
          %s510 = sshll.u32 %s507, 4
          %s511 = int_to_ptr.hbm [resolvable:$true] %s510
          %516 = dma.vmem_to_hbm [thread:$0]  %s509, 256, %s511, %s496, 128, 128, 8
        $region56: #{tpu_custom_call.1} parent=39 // pred_fallthru
          _
      $region40: #{tpu_custom_call.1} parent=5 // pred_fallthru
        _
      %p517 = scmp.le.s32.totalorder 2, %s18
      // Predicated region
      $region57: #{tpu_custom_call.1} parent=5 // pred_check
        %p518 = pneg %p517
      $region58: #{tpu_custom_call.1} parent=5 // pred_check_branch
        %520 = sbr.rel (%p518) target = $region60
      $region59: #{tpu_custom_call.1} parent=5 // pred_region
        %s521 = ssub.s32 %s18, 2
        // Predicated region
        $region61: #{tpu_custom_call.1} parent=59 // pred_check
          %p522 = pneg %p157
        $region62: #{tpu_custom_call.1} parent=59 // pred_check_branch
          %524 = sbr.rel (%p522) target = $region64
        $region63: #{tpu_custom_call.1} parent=59 // pred_region
          %s525 = sand.u32 %s142, 1
          %s526 = scalar_lea.sflag [#allocation4], %s525
          %s527 = sand.u32 %s142, 1
          %s528 = smul.addr %s527, 16
          %s529 = scalar_lea.vmem [#allocation8], %s528
          %531 = dma.done %s526, 256
        $region64: #{tpu_custom_call.1} parent=59 // pred_fallthru
          _
      $region60: #{tpu_custom_call.1} parent=5 // pred_fallthru
        _
    $region6: #{tpu_custom_call.1} parent=1 // loop_footer
      %s22 = sadd.s32 1, %s18
    $region7: #{tpu_custom_call.1} parent=1 // loop_footer_branch
      %17 = sbr.rel target = $region3
    $region8: #{tpu_custom_call.1} parent=1 // loop_exit
      _
    %532 = vsyncpa [#allocation3], 1
    %s533 = scalar_lea.sflag [#allocation3], 1
    %534 = vsyncpa %s533, 1
    %535 = vsyncpa [#allocation6], 1
    %536 = vsyncpa [#allocation4], 1
    %s537 = scalar_lea.sflag [#allocation4], 1
    %538 = vsyncpa %s537, 1

</llo_original>
